<compile_context>
chip_gen: v6e
topology: v6e:2x2x1
jax: 0.10.0
libtpu: 0.0.40
codegen_flags: <defaults>
</compile_context>

<pallas_src>
import functools

import jax
import jax.numpy as jnp
from jax.experimental import pallas as pl
from jax.experimental.pallas import tpu as pltpu


def tarnet_kernel(
    xt_ref,                      # (TB, in_dim + 1): [x | t]
    wc1_ref, bc1_ref,            # core layer 1 ((in_dim+1, c1) w/ zero row for t)
    wc2_ref, bc2_ref,            # core layer 2
    wbr_ref, bbr_ref,            # fused branches: (c2, 2*bd) -> [h1 | h0]
    whd_ref, bhd_ref,            # heads: block-diag (2*bd, 4*od) or stacked (2*bd, 2*od)
    out_ref,                     # (TB, 2*od): [mu | log_sigma_square]
    *, in_dim, out_dim, branch_dim, split_heads,
):
    xt = xt_ref[...]
    # t in {0,1} is exact in bf16; blend math kept in f32 (safe on v5e VPU).
    t = xt[:, in_dim:in_dim + 1].astype(jnp.float32)          # (TB, 1)
    cd = wc1_ref.dtype                                         # compute/weight dtype

    # core MLP (Linear + ReLU); extra zero row in wc1 kills the t column.
    h = jnp.maximum(
        jnp.dot(xt.astype(cd), wc1_ref[...], preferred_element_type=jnp.float32)
        + bc1_ref[...], 0.0)
    h = jnp.maximum(
        jnp.dot(h.astype(cd), wc2_ref[...], preferred_element_type=jnp.float32)
        + bc2_ref[...], 0.0)

    # both branches in one dot: hb = [h1 | h0]
    hb = jnp.maximum(
        jnp.dot(h.astype(cd), wbr_ref[...], preferred_element_type=jnp.float32)
        + bbr_ref[...], 0.0)

    if split_heads:
        # bd >= 128: two (bd, 2*od) dots avoid multiplying zero blocks on the MXU.
        w = whd_ref[...]
        treated = (jnp.dot(hb[:, :branch_dim].astype(cd), w[:branch_dim],
                           preferred_element_type=jnp.float32)
                   + bhd_ref[:, : 2 * out_dim])
        control = (jnp.dot(hb[:, branch_dim:].astype(cd), w[branch_dim:],
                           preferred_element_type=jnp.float32)
                   + bhd_ref[:, 2 * out_dim:])
    else:
        # all four heads in one block-diagonal dot: [mu_1 | ls_1 | mu_0 | ls_0]
        heads = (jnp.dot(hb.astype(cd), whd_ref[...],
                         preferred_element_type=jnp.float32) + bhd_ref[...])
        treated = heads[:, : 2 * out_dim]
        control = heads[:, 2 * out_dim:]

    # treatment blend, single lane-packed store: [mu | log_sigma_square]
    # TODO(synk): for out_dim >= 32, A/B zero-padding the head columns to a
    # 128-lane output for unmasked stores (not worth it at out_dim=4).
    out_ref[...] = control + t * (treated - control)


def _pack_params(p, weight_dtype, split_heads):
    """Fuse the 16 raw Linear weights/biases into 8 packed arrays."""
    c1 = p["wc1"].shape[1]
    bd = p["wb1"].shape[1]
    od = p["wmu1"].shape[1]

    # core layer 1: extra zero row so the appended t column contributes 0.
    wc1 = jnp.concatenate([p["wc1"], jnp.zeros((1, c1), p["wc1"].dtype)], axis=0)

    # fused branches: (c2, 2*bd)
    wbr = jnp.concatenate([p["wb1"], p["wb0"]], axis=1)
    bbr = jnp.concatenate([p["bb1"], p["bb0"]], axis=1)

    if split_heads:
        # stacked heads: rows [0:bd] = [mu1|ls1], rows [bd:2bd] = [mu0|ls0]
        whd = jnp.concatenate([
            jnp.concatenate([p["wmu1"], p["wls1"]], axis=1),
            jnp.concatenate([p["wmu0"], p["wls0"]], axis=1),
        ], axis=0)                                             # (2*bd, 2*od)
    else:
        # fused heads, block-diagonal: (2*bd, 4*od)
        z = jnp.zeros((bd, 2 * od), p["wmu1"].dtype)
        whd = jnp.concatenate([
            jnp.concatenate([p["wmu1"], p["wls1"], z], axis=1),
            jnp.concatenate([z, p["wmu0"], p["wls0"]], axis=1),
        ], axis=0)
    bhd = jnp.concatenate([p["bmu1"], p["bls1"], p["bmu0"], p["bls0"]], axis=1)

    f32 = jnp.float32
    return [
        wc1.astype(weight_dtype), p["bc1"].astype(f32),
        p["wc2"].astype(weight_dtype), p["bc2"].astype(f32),
        wbr.astype(weight_dtype), bbr.astype(f32),
        whd.astype(weight_dtype), bhd.astype(f32),
    ]


def _round_up(a, m):
    return ((a + m - 1) // m) * m


def _cdiv(a, b):
    return -(-a // b)


def gaussian_tarnet_forward(x, t, params, *, block_b=2048,
                            weight_dtype=jnp.float32, input_dtype=None):
    """x: (B, in_dim) f32, t: (B, 1) f32, params: dict of Linear weights/biases.

    Returns (mu, log_sigma_square), each (B, out_dim) f32.
    weight_dtype / input_dtype = jnp.bfloat16 halves the dominant HBM traffic
    on v6e/v7x (f32 accumulation; blend stays f32, exact for binary t).
    """
    B, in_dim = x.shape
    od = params["wmu1"].shape[1]
    bd = params["wb1"].shape[1]
    split_heads = bd >= 128
    if input_dtype is None:
        input_dtype = weight_dtype

    weights = _pack_params(params, weight_dtype, split_heads)

    # fold t into the x tile (one fewer input stream per grid step)
    xt = jnp.concatenate([x, t.astype(x.dtype)], axis=1).astype(input_dtype)

    # batch tiling:
    #   * single tile whenever B fits in block_b (no forced split: on 1-TC
    #     v5e/v6e a split is a pure loss),
    #   * otherwise an EVEN number of balanced steps so v7x's 2 TensorCores
    #     share the "parallel" grid axis evenly.
    b8 = _round_up(max(B, 8), 8)
    bb_req = max(_round_up(block_b, 8), 8)
    if b8 <= bb_req:
        bb = b8
        n_steps = 1
    else:
        n_steps = _cdiv(B, bb_req)
        if n_steps % 2 == 1:
            n_steps += 1
        bb = _round_up(_cdiv(B, n_steps), 8)
    b_pad = bb * n_steps
    if b_pad != B:
        xt = jnp.pad(xt, ((0, b_pad - B), (0, 0)))

    grid = (n_steps,)

    def weight_spec(arr):
        # weights/biases are tiny (< ~20 KB total): whole array resident in VMEM.
        return pl.BlockSpec(arr.shape, lambda i: (0, 0))

    in_specs = [pl.BlockSpec((bb, in_dim + 1), lambda i: (i, 0))] + \
               [weight_spec(w) for w in weights]
    out_specs = pl.BlockSpec((bb, 2 * od), lambda i: (i, 0))
    out_shape = jax.ShapeDtypeStruct((b_pad, 2 * od), jnp.float32)

    kern = functools.partial(tarnet_kernel, in_dim=in_dim, out_dim=od,
                             branch_dim=bd, split_heads=split_heads)
    fused = pl.pallas_call(
        kern,
        out_shape=out_shape,
        grid_spec=pltpu.PrefetchScalarGridSpec(
            num_scalar_prefetch=0,
            grid=grid,
            in_specs=in_specs,
            out_specs=out_specs,
        ),
        compiler_params=pltpu.CompilerParams(
            dimension_semantics=("parallel",),
            # explicit limit: safe on v5e's 16 MiB scoped default, well under
            # v7x's 64 MiB physical; bb=2048 needs only ~6 MiB double-buffered.
            vmem_limit_bytes=32 * 1024 * 1024,
        ),
    )(xt, *weights)

    fused = fused[:B]
    return fused[:, :od], fused[:, od:]


def init_params(key, in_dim, layer_dims_core, layer_dims_branch, out_dim):
    """Deterministic synthetic parameter init (shapes per GaussianTARNet.__init__)."""
    dims_core = [in_dim] + layer_dims_core
    dims_branch = [layer_dims_core[-1]] + layer_dims_branch

    params = {}
    keys = iter(jax.random.split(key, 32))

    def linear(d_in, d_out):
        w = jax.random.normal(next(keys), (d_in, d_out), jnp.float32) * (1.0 / jnp.sqrt(d_in))
        b = jax.random.normal(next(keys), (1, d_out), jnp.float32) * 0.01
        return w, b

    # core: two Linear+ReLU layers (layer_dims_core has length 2 here)
    params["wc1"], params["bc1"] = linear(dims_core[0], dims_core[1])
    params["wc2"], params["bc2"] = linear(dims_core[1], dims_core[2])
    # branch 1 + heads
    params["wb1"], params["bb1"] = linear(dims_branch[0], dims_branch[1])
    params["wmu1"], params["bmu1"] = linear(layer_dims_branch[-1], out_dim)
    params["wls1"], params["bls1"] = linear(layer_dims_branch[-1], out_dim)
    # branch 0 + heads
    params["wb0"], params["bb0"] = linear(dims_branch[0], dims_branch[1])
    params["wmu0"], params["bmu0"] = linear(layer_dims_branch[-1], out_dim)
    params["wls0"], params["bls0"] = linear(layer_dims_branch[-1], out_dim)
    return params


def reference_forward(x, t, p):
    h = jnp.maximum(x @ p["wc1"] + p["bc1"], 0.0)
    h = jnp.maximum(h @ p["wc2"] + p["bc2"], 0.0)
    h1 = jnp.maximum(h @ p["wb1"] + p["bb1"], 0.0)
    mu1 = h1 @ p["wmu1"] + p["bmu1"]
    ls1 = h1 @ p["wls1"] + p["bls1"]
    h0 = jnp.maximum(h @ p["wb0"] + p["bb0"], 0.0)
    mu0 = h0 @ p["wmu0"] + p["bmu0"]
    ls0 = h0 @ p["wls0"] + p["bls0"]
    return t * mu1 + (1 - t) * mu0, t * ls1 + (1 - t) * ls0


if __name__ == "__main__":
    # small deterministic example (TARNet: 2 core layers, 1 branch layer)
    B, in_dim = 16, 16
    layer_dims_core = [32, 32]
    layer_dims_branch = [32]
    out_dim = 4

    key = jax.random.PRNGKey(0)
    k_x, k_t, k_p = jax.random.split(key, 3)

    x = jax.random.normal(k_x, (B, in_dim), jnp.float32)
    t = (jax.random.uniform(k_t, (B, 1)) > 0.5).astype(jnp.float32)
    params = init_params(k_p, in_dim, layer_dims_core, layer_dims_branch, out_dim)

    # single-tile path (default tile, f32 everywhere -> exact vs reference)
    mu, log_sigma_square = gaussian_tarnet_forward(x, t, params)
    mu = jax.block_until_ready(mu)
    log_sigma_square = jax.block_until_ready(log_sigma_square)

    mu_ref, ls_ref = reference_forward(x, t, params)
    assert mu.shape == (B, out_dim) and log_sigma_square.shape == (B, out_dim)
    assert jnp.allclose(mu, mu_ref, atol=1e-5, rtol=1e-5)
    assert jnp.allclose(log_sigma_square, ls_ref, atol=1e-5, rtol=1e-5)

    # multi-step path (exercises balanced even grid + batch padding)
    B2 = 40
    x2 = jax.random.normal(jax.random.PRNGKey(1), (B2, in_dim), jnp.float32)
    t2 = (jax.random.uniform(jax.random.PRNGKey(2), (B2, 1)) > 0.5).astype(jnp.float32)
    mu2, ls2 = gaussian_tarnet_forward(x2, t2, params, block_b=16)
    mu2 = jax.block_until_ready(mu2)
    ls2 = jax.block_until_ready(ls2)
    mu2_ref, ls2_ref = reference_forward(x2, t2, params)
    assert jnp.allclose(mu2, mu2_ref, atol=1e-5, rtol=1e-5)
    assert jnp.allclose(ls2, ls2_ref, atol=1e-5, rtol=1e-5)

    print("KERNEL_OK")
</pallas_src>

<mosaic_0001>
module attributes {stable_mosaic.version = 11 : i64} {
  func.func @tarnet_kernel(%arg0: i32, %arg1: memref<16x17xf32, #tpu.memory_space<vmem>>, %arg2: memref<17x32xf32, #tpu.memory_space<vmem>>, %arg3: memref<1x32xf32, #tpu.memory_space<vmem>>, %arg4: memref<32x32xf32, #tpu.memory_space<vmem>>, %arg5: memref<1x32xf32, #tpu.memory_space<vmem>>, %arg6: memref<32x64xf32, #tpu.memory_space<vmem>>, %arg7: memref<1x64xf32, #tpu.memory_space<vmem>>, %arg8: memref<64x16xf32, #tpu.memory_space<vmem>>, %arg9: memref<1x16xf32, #tpu.memory_space<vmem>>, %arg10: memref<16x8xf32, #tpu.memory_space<vmem>>) attributes {dimension_semantics = [#tpu.dimension_semantics<parallel>], iteration_bounds = array<i64: 1>, scalar_prefetch = 0 : i64, scratch_operands = 0 : i64, tpu.core_type = #tpu.core_type<tc>, window_params = [{transform_indices = @transform_0, window_bounds = array<i64: 16, 17>}, {pipeline_mode = #tpu.pipeline_mode<synchronous>, transform_indices = @transform_1, window_bounds = array<i64: 17, 32>}, {pipeline_mode = #tpu.pipeline_mode<synchronous>, transform_indices = @transform_2, window_bounds = array<i64: 1, 32>}, {pipeline_mode = #tpu.pipeline_mode<synchronous>, transform_indices = @transform_3, window_bounds = array<i64: 32, 32>}, {pipeline_mode = #tpu.pipeline_mode<synchronous>, transform_indices = @transform_4, window_bounds = array<i64: 1, 32>}, {pipeline_mode = #tpu.pipeline_mode<synchronous>, transform_indices = @transform_5, window_bounds = array<i64: 32, 64>}, {pipeline_mode = #tpu.pipeline_mode<synchronous>, transform_indices = @transform_6, window_bounds = array<i64: 1, 64>}, {pipeline_mode = #tpu.pipeline_mode<synchronous>, transform_indices = @transform_7, window_bounds = array<i64: 64, 16>}, {pipeline_mode = #tpu.pipeline_mode<synchronous>, transform_indices = @transform_8, window_bounds = array<i64: 1, 16>}, {transform_indices = @transform_9, window_bounds = array<i64: 16, 8>}]} {
    %c0 = arith.constant 0 : index
    %c0_0 = arith.constant 0 : index
    %0 = vector.load %arg1[%c0, %c0_0] : memref<16x17xf32, #tpu.memory_space<vmem>>, vector<16x17xf32>
    %1 = vector.extract_strided_slice %0 {offsets = [0, 16], sizes = [16, 1], strides = [1, 1]} : vector<16x17xf32> to vector<16x1xf32>
    %c0_1 = arith.constant 0 : index
    %c0_2 = arith.constant 0 : index
    %2 = vector.load %arg2[%c0_1, %c0_2] : memref<17x32xf32, #tpu.memory_space<vmem>>, vector<17x32xf32>
    %cst = arith.constant dense<0.000000e+00> : vector<16x32xf32>
    %3 = tpu.matmul %0, %2, %cst {dimension_numbers = #tpu.dot_dimension_numbers<[1], [0], [0], [1], [0, 0, 1, 1], [], []>} : vector<16x17xf32>, vector<17x32xf32>, vector<16x32xf32> -> vector<16x32xf32>
    %c0_3 = arith.constant 0 : index
    %c0_4 = arith.constant 0 : index
    %4 = vector.load %arg3[%c0_3, %c0_4] : memref<1x32xf32, #tpu.memory_space<vmem>>, vector<1x32xf32>
    %5 = vector.broadcast %4 : vector<1x32xf32> to vector<16x32xf32>
    %6 = arith.addf %3, %5 : vector<16x32xf32>
    %cst_5 = arith.constant 0.000000e+00 : f32
    %7 = vector.broadcast %cst_5 : f32 to vector<16x32xf32>
    %8 = arith.maximumf %6, %7 : vector<16x32xf32>
    %c0_6 = arith.constant 0 : index
    %c0_7 = arith.constant 0 : index
    %9 = vector.load %arg4[%c0_6, %c0_7] : memref<32x32xf32, #tpu.memory_space<vmem>>, vector<32x32xf32>
    %cst_8 = arith.constant dense<0.000000e+00> : vector<16x32xf32>
    %10 = tpu.matmul %8, %9, %cst_8 {dimension_numbers = #tpu.dot_dimension_numbers<[1], [0], [0], [1], [0, 0, 1, 1], [], []>} : vector<16x32xf32>, vector<32x32xf32>, vector<16x32xf32> -> vector<16x32xf32>
    %c0_9 = arith.constant 0 : index
    %c0_10 = arith.constant 0 : index
    %11 = vector.load %arg5[%c0_9, %c0_10] : memref<1x32xf32, #tpu.memory_space<vmem>>, vector<1x32xf32>
    %12 = vector.broadcast %11 : vector<1x32xf32> to vector<16x32xf32>
    %13 = arith.addf %10, %12 : vector<16x32xf32>
    %cst_11 = arith.constant 0.000000e+00 : f32
    %14 = vector.broadcast %cst_11 : f32 to vector<16x32xf32>
    %15 = arith.maximumf %13, %14 : vector<16x32xf32>
    %c0_12 = arith.constant 0 : index
    %c0_13 = arith.constant 0 : index
    %16 = vector.load %arg6[%c0_12, %c0_13] : memref<32x64xf32, #tpu.memory_space<vmem>>, vector<32x64xf32>
    %cst_14 = arith.constant dense<0.000000e+00> : vector<16x64xf32>
    %17 = tpu.matmul %15, %16, %cst_14 {dimension_numbers = #tpu.dot_dimension_numbers<[1], [0], [0], [1], [0, 0, 1, 1], [], []>} : vector<16x32xf32>, vector<32x64xf32>, vector<16x64xf32> -> vector<16x64xf32>
    %c0_15 = arith.constant 0 : index
    %c0_16 = arith.constant 0 : index
    %18 = vector.load %arg7[%c0_15, %c0_16] : memref<1x64xf32, #tpu.memory_space<vmem>>, vector<1x64xf32>
    %19 = vector.broadcast %18 : vector<1x64xf32> to vector<16x64xf32>
    %20 = arith.addf %17, %19 : vector<16x64xf32>
    %cst_17 = arith.constant 0.000000e+00 : f32
    %21 = vector.broadcast %cst_17 : f32 to vector<16x64xf32>
    %22 = arith.maximumf %20, %21 : vector<16x64xf32>
    %c0_18 = arith.constant 0 : index
    %c0_19 = arith.constant 0 : index
    %23 = vector.load %arg8[%c0_18, %c0_19] : memref<64x16xf32, #tpu.memory_space<vmem>>, vector<64x16xf32>
    %cst_20 = arith.constant dense<0.000000e+00> : vector<16x16xf32>
    %24 = tpu.matmul %22, %23, %cst_20 {dimension_numbers = #tpu.dot_dimension_numbers<[1], [0], [0], [1], [0, 0, 1, 1], [], []>} : vector<16x64xf32>, vector<64x16xf32>, vector<16x16xf32> -> vector<16x16xf32>
    %c0_21 = arith.constant 0 : index
    %c0_22 = arith.constant 0 : index
    %25 = vector.load %arg9[%c0_21, %c0_22] : memref<1x16xf32, #tpu.memory_space<vmem>>, vector<1x16xf32>
    %26 = vector.broadcast %25 : vector<1x16xf32> to vector<16x16xf32>
    %27 = arith.addf %24, %26 : vector<16x16xf32>
    %28 = vector.extract_strided_slice %27 {offsets = [0, 0], sizes = [16, 8], strides = [1, 1]} : vector<16x16xf32> to vector<16x8xf32>
    %29 = vector.extract_strided_slice %27 {offsets = [0, 8], sizes = [16, 8], strides = [1, 1]} : vector<16x16xf32> to vector<16x8xf32>
    %30 = arith.subf %28, %29 : vector<16x8xf32>
    %31 = vector.broadcast %1 : vector<16x1xf32> to vector<16x8xf32>
    %32 = arith.mulf %31, %30 : vector<16x8xf32>
    %33 = arith.addf %29, %32 : vector<16x8xf32>
    %c0_23 = arith.constant 0 : index
    %c0_24 = arith.constant 0 : index
    %34 = vector.load %arg10[%c0_23, %c0_24] : memref<16x8xf32, #tpu.memory_space<vmem>>, vector<16x8xf32>
    tpu.vector_store %arg10[%c0_23, %c0_24], %33 {strides = array<i32>} : memref<16x8xf32, #tpu.memory_space<vmem>>, vector<16x8xf32>,
    return
  }
  func.func @transform_0(%arg0: i32) -> (i32, i32) {
    %c0_i32 = arith.constant 0 : i32
    %c0_i32_0 = arith.constant 0 : i32
    return %arg0, %c0_i32 : i32, i32
  }
  func.func @transform_1(%arg0: i32) -> (i32, i32) {
    %c0_i32 = arith.constant 0 : i32
    %c0_i32_0 = arith.constant 0 : i32
    %c0_i32_1 = arith.constant 0 : i32
    return %c0_i32, %c0_i32_0 : i32, i32
  }
  func.func @transform_2(%arg0: i32) -> (i32, i32) {
    %c0_i32 = arith.constant 0 : i32
    %c0_i32_0 = arith.constant 0 : i32
    %c0_i32_1 = arith.constant 0 : i32
    return %c0_i32, %c0_i32_0 : i32, i32
  }
  func.func @transform_3(%arg0: i32) -> (i32, i32) {
    %c0_i32 = arith.constant 0 : i32
    %c0_i32_0 = arith.constant 0 : i32
    %c0_i32_1 = arith.constant 0 : i32
    return %c0_i32, %c0_i32_0 : i32, i32
  }
  func.func @transform_4(%arg0: i32) -> (i32, i32) {
    %c0_i32 = arith.constant 0 : i32
    %c0_i32_0 = arith.constant 0 : i32
    %c0_i32_1 = arith.constant 0 : i32
    return %c0_i32, %c0_i32_0 : i32, i32
  }
  func.func @transform_5(%arg0: i32) -> (i32, i32) {
    %c0_i32 = arith.constant 0 : i32
    %c0_i32_0 = arith.constant 0 : i32
    %c0_i32_1 = arith.constant 0 : i32
    return %c0_i32, %c0_i32_0 : i32, i32
  }
  func.func @transform_6(%arg0: i32) -> (i32, i32) {
    %c0_i32 = arith.constant 0 : i32
    %c0_i32_0 = arith.constant 0 : i32
    %c0_i32_1 = arith.constant 0 : i32
    return %c0_i32, %c0_i32_0 : i32, i32
  }
  func.func @transform_7(%arg0: i32) -> (i32, i32) {
    %c0_i32 = arith.constant 0 : i32
    %c0_i32_0 = arith.constant 0 : i32
    %c0_i32_1 = arith.constant 0 : i32
    return %c0_i32, %c0_i32_0 : i32, i32
  }
  func.func @transform_8(%arg0: i32) -> (i32, i32) {
    %c0_i32 = arith.constant 0 : i32
    %c0_i32_0 = arith.constant 0 : i32
    %c0_i32_1 = arith.constant 0 : i32
    return %c0_i32, %c0_i32_0 : i32, i32
  }
  func.func @transform_9(%arg0: i32) -> (i32, i32) {
    %c0_i32 = arith.constant 0 : i32
    %c0_i32_0 = arith.constant 0 : i32
    return %arg0, %c0_i32 : i32, i32
  }
}

</mosaic_0001>

<llo_original>
// kernel: tpu_custom_call.1
$region0: #{tpu_custom_call.1}
  #allocation0 [shape = 'u32[]', space=smem, size = 0x4, offset = 0x4, fixed_abs, tag = 'smem constant byte address 0x4 - core index']
  #allocation1 [shape = 'u32[144,128]{1,0:T(1,128)}', space=vmem, size = 0x12000, scoped, tag = 'internal scratch']
  %s0 = inlined_call_operand.vmem [shape: f32[16,17], index: 0, kind: input, shape index: {}]
  %s1 = inlined_call_operand.hbm [shape: f32[17,32], index: 1, kind: input, shape index: {}]
  %s2 = inlined_call_operand.vmem [shape: f32[1,32], index: 2, kind: input, shape index: {}]
  %s3 = inlined_call_operand.vmem [shape: f32[32,32], index: 3, kind: input, shape index: {}]
  %s4 = inlined_call_operand.vmem [shape: f32[1,32], index: 4, kind: input, shape index: {}]
  %s5 = inlined_call_operand.vmem [shape: f32[32,64], index: 5, kind: input, shape index: {}]
  %s6 = inlined_call_operand.vmem [shape: f32[1,64], index: 6, kind: input, shape index: {}]
  %s7 = inlined_call_operand.vmem [shape: f32[64,16], index: 7, kind: input, shape index: {}]
  %s8 = inlined_call_operand.vmem [shape: f32[1,16], index: 8, kind: input, shape index: {}]
  %s9 = inlined_call_operand.vmem [shape: f32[16,8], index: 9, kind: output, shape index: {}]
  %s10 = sld [smem:[#allocation0]]
  $region50: #{tpu_custom_call.1} parent=0
    _
  %s12 = ssub.s32 1, %s10
  %s13 = scalar_select 0, %s12, %s10
  $region1: #{tpu_custom_call.1} parent=0
    #allocation2 [shape = 'u8[12288]{0}', space=vmem, size = 0x3000, scoped, tag = 'input window, operand 1, single buffered']
    #allocation3 [shape = 's32[1]{0}', space=sflag, size = 0x4, scoped, tag = 'scoped memory for tpu_custom_call.1']
    %14 = vsyncpa [#allocation3], 0
    // Predicated region
    $region2: #{tpu_custom_call.1} parent=1 // pred_check
      _
    $region3: #{tpu_custom_call.1} parent=1 // pred_check_branch
      %16 = sbr.rel (0) target = $region5
    $region4: #{tpu_custom_call.1} parent=1 // pred_region
      _
    $region5: #{tpu_custom_call.1} parent=1 // pred_fallthru
      _
    // Predicated region
    $region6: #{tpu_custom_call.1} parent=1 // pred_check
      _
    $region7: #{tpu_custom_call.1} parent=1 // pred_check_branch
      %18 = sbr.rel (0) target = $region9
    $region8: #{tpu_custom_call.1} parent=1 // pred_region
      %s20 = ssub.s32 384, 384
      %21 = vsyncadd [#allocation3], %s20
      %s22 = sshll.u32 [#allocation2], 4
      %s23 = int_to_ptr.vmem [resolvable:$true] %s22
      %28 = dma.hbm_to_vmem [thread:$0]  %s1, 384, %s23, [#allocation3], 128, 128, 8
    $region9: #{tpu_custom_call.1} parent=1 // pred_fallthru
      _
    // Predicated region
    $region10: #{tpu_custom_call.1} parent=1 // pred_check
      _
    $region11: #{tpu_custom_call.1} parent=1 // pred_check_branch
      %30 = sbr.rel (0) target = $region13
    $region12: #{tpu_custom_call.1} parent=1 // pred_region
      _
    $region13: #{tpu_custom_call.1} parent=1 // pred_fallthru
      _
    // Predicated region
    $region14: #{tpu_custom_call.1} parent=1 // pred_check
      _
    $region15: #{tpu_custom_call.1} parent=1 // pred_check_branch
      %32 = sbr.rel (0) target = $region17
    $region16: #{tpu_custom_call.1} parent=1 // pred_region
      _
    $region17: #{tpu_custom_call.1} parent=1 // pred_fallthru
      _
    // Predicated region
    $region18: #{tpu_custom_call.1} parent=1 // pred_check
      _
    $region19: #{tpu_custom_call.1} parent=1 // pred_check_branch
      %34 = sbr.rel (0) target = $region21
    $region20: #{tpu_custom_call.1} parent=1 // pred_region
      _
    $region21: #{tpu_custom_call.1} parent=1 // pred_fallthru
      _
    // Predicated region
    $region22: #{tpu_custom_call.1} parent=1 // pred_check
      _
    $region23: #{tpu_custom_call.1} parent=1 // pred_check_branch
      %36 = sbr.rel (0) target = $region25
    $region24: #{tpu_custom_call.1} parent=1 // pred_region
      _
    $region25: #{tpu_custom_call.1} parent=1 // pred_fallthru
      _
    // Predicated region
    $region26: #{tpu_custom_call.1} parent=1 // pred_check
      _
    $region27: #{tpu_custom_call.1} parent=1 // pred_check_branch
      %38 = sbr.rel (0) target = $region29
    $region28: #{tpu_custom_call.1} parent=1 // pred_region
      _
    $region29: #{tpu_custom_call.1} parent=1 // pred_fallthru
      _
    // Predicated region
    $region30: #{tpu_custom_call.1} parent=1 // pred_check
      _
    $region31: #{tpu_custom_call.1} parent=1 // pred_check_branch
      %40 = sbr.rel (0) target = $region33
    $region32: #{tpu_custom_call.1} parent=1 // pred_region
      _
    $region33: #{tpu_custom_call.1} parent=1 // pred_fallthru
      _
    // Predicated region
    $region34: #{tpu_custom_call.1} parent=1 // pred_check
      _
    $region35: #{tpu_custom_call.1} parent=1 // pred_check_branch
      %42 = sbr.rel (0) target = $region37
    $region36: #{tpu_custom_call.1} parent=1 // pred_region
      _
    $region37: #{tpu_custom_call.1} parent=1 // pred_fallthru
      _
    // Predicated region
    $region38: #{tpu_custom_call.1} parent=1 // pred_check
      _
    $region39: #{tpu_custom_call.1} parent=1 // pred_check_branch
      %44 = sbr.rel (0) target = $region41
    $region40: #{tpu_custom_call.1} parent=1 // pred_region
      %45 = dma.done [#allocation3], 384
    $region41: #{tpu_custom_call.1} parent=1 // pred_fallthru
      _
    %v46 = vld [vmem:[%s0] sm:$0xff]
    %v47 = vld [vmem:[%s0 + $0x8] sm:$0xff]
    %v48 = vld [vmem:[#allocation2] sm:$0xff]
    %v49 = vld [vmem:[#allocation2 + $0x8] sm:$0xff]
    %v50 = vld [vmem:[#allocation2 + $0x10] sm:$0x1]
    %v51 = vld [vmem:[%s2] sm:$0x1]
    %v53 = vlaneseq
    %v54 = vshrl.u32 %v53, 7
    %v55 = vsub.s32 0, %v54
    %v56 = vrot.slane %v51, %v55
    %vm58 = vcmask 138240
    %v60 = vsel %vm58, %v46, 0
    %v63 = vsel %vm58, %v47, 0
    %vm65 = vcmask 1040384
    %v67 = vsel %vm65, %v50, 0
    %69 = vmatprep.subr.mxu0 0.0
    %70 = vmatpush1.msra.mxu0 0.0
    %71 = vmatprep.subr.mxu0 0.0
    %72 = vmatpush1.msra.mxu0 0.0
    %73 = vmatprep.subr.mxu0 0.0
    %74 = vmatpush1.msra.mxu0 0.0
    %75 = vmatprep.subr.mxu0 0.0
    %76 = vmatpush1.msra.mxu0 0.0
    %77 = vmatprep.subr.mxu0 0.0
    %78 = vmatpush1.msra.mxu0 0.0
    %79 = vmatprep.subr.mxu0 0.0
    %80 = vmatpush1.msra.mxu0 0.0
    %81 = vmatprep.subr.mxu0 0.0
    %82 = vmatpush1.msra.mxu0 0.0
    %83 = vmatprep.subr.mxu0 0.0
    %84 = vmatpush1.msra.mxu0 0.0
    %85 = vmatprep.subr.mxu0 0.0
    %86 = vmatpush1.msra.mxu0 0.0
    %87 = vmatprep.subr.mxu0 0.0
    %88 = vmatpush1.msra.mxu0 0.0
    %89 = vmatprep.subr.mxu0 0.0
    %90 = vmatpush1.msra.mxu0 0.0
    %91 = vmatprep.subr.mxu0 0.0
    %92 = vmatpush1.msra.mxu0 0.0
    %93 = vmatprep.subr.mxu0 0.0
    %94 = vmatpush1.msra.mxu0 0.0
    %95 = vmatprep.subr.mxu0 0.0
    %96 = vmatpush1.msra.mxu0 %v67
    %97 = vmatprep.subr.mxu0 0.0
    %98 = vmatpush1.msra.mxu0 %v49
    %99 = vmatprep.subr.mxu0 0.0
    %100 = vmatpush1.msra.mxu0 %v48
    %101 = vmatprep.subr.mxu0 0.0
    %102 = vmatpush2.msra.mxu0 0.0
    %103 = vmatprep.subr.mxu0 0.0
    %104 = vmatpush2.msra.mxu0 0.0
    %105 = vmatprep.subr.mxu0 0.0
    %106 = vmatpush2.msra.mxu0 0.0
    %107 = vmatprep.subr.mxu0 0.0
    %108 = vmatpush2.msra.mxu0 0.0
    %109 = vmatprep.subr.mxu0 0.0
    %110 = vmatpush2.msra.mxu0 0.0
    %111 = vmatprep.subr.mxu0 0.0
    %112 = vmatpush2.msra.mxu0 0.0
    %113 = vmatprep.subr.mxu0 0.0
    %114 = vmatpush2.msra.mxu0 0.0
    %115 = vmatprep.subr.mxu0 0.0
    %116 = vmatpush2.msra.mxu0 0.0
    %117 = vmatprep.subr.mxu0 0.0
    %118 = vmatpush2.msra.mxu0 0.0
    %119 = vmatprep.subr.mxu0 0.0
    %120 = vmatpush2.msra.mxu0 0.0
    %121 = vmatprep.subr.mxu0 0.0
    %122 = vmatpush2.msra.mxu0 0.0
    %123 = vmatprep.subr.mxu0 0.0
    %124 = vmatpush2.msra.mxu0 0.0
    %125 = vmatprep.subr.mxu0 0.0
    %126 = vmatpush2.msra.mxu0 0.0
    %127 = vmatprep.subr.mxu0 0.0
    %128 = vmatpush2.msra.mxu0 0.0
    %129 = vmatprep.subr.mxu0 0.0
    %130 = vmatpush2.msra.mxu0 0.0
    %131 = vmatprep.subr.mxu0 0.0
    %132 = vmatpush2.msra.mxu0 0.0
    %133 = vmatprep.mubr.f32.mxu0 0.0
    %134 = vmatmul.mubr.f32.gmra.mxu0 %v60
    %v135 = vpop.f32.mrf.mxu0
    %v136 = vadd.f32 %v56, %v135
    %v137 = vpop.f32.mrf.mxu0
    %138 = vmatprep.mubr.f32.mxu0 0.0
    %139 = vmatmul.mubr.f32.gmra.mxu0 %v63
    %v140 = vpop.f32.mrf.mxu0
    %v141 = vadd.f32 %v56, %v140
    %v142 = vpop.f32.mrf.mxu0
    %143 = vdwg.mxu0
    %v144 = vmax.f32 %v136, 0.0
    %v145 = vmax.f32 %v141, 0.0
    %v146 = vld [vmem:[%s3] sm:$0xff]
    %v147 = vld [vmem:[%s3 + $0x8] sm:$0xff]
    %v148 = vld [vmem:[%s3 + $0x10] sm:$0xff]
    %v149 = vld [vmem:[%s3 + $0x18] sm:$0xff]
    %v150 = vld [vmem:[%s4] sm:$0x1]
    %v152 = vlaneseq
    %v153 = vshrl.u32 %v152, 7
    %v154 = vsub.s32 0, %v153
    %v155 = vrot.slane %v150, %v154
    %vm157 = vcmask 261120
    %v159 = vsel %vm157, %v144, 0
    %v162 = vsel %vm157, %v145, 0
    %164 = vmatprep.subr.mxu0 0.0
    %165 = vmatpush1.msra.mxu0 0.0
    %166 = vmatprep.subr.mxu0 0.0
    %167 = vmatpush1.msra.mxu0 0.0
    %168 = vmatprep.subr.mxu0 0.0
    %169 = vmatpush1.msra.mxu0 0.0
    %170 = vmatprep.subr.mxu0 0.0
    %171 = vmatpush1.msra.mxu0 0.0
    %172 = vmatprep.subr.mxu0 0.0
    %173 = vmatpush1.msra.mxu0 0.0
    %174 = vmatprep.subr.mxu0 0.0
    %175 = vmatpush1.msra.mxu0 0.0
    %176 = vmatprep.subr.mxu0 0.0
    %177 = vmatpush1.msra.mxu0 0.0
    %178 = vmatprep.subr.mxu0 0.0
    %179 = vmatpush1.msra.mxu0 0.0
    %180 = vmatprep.subr.mxu0 0.0
    %181 = vmatpush1.msra.mxu0 0.0
    %182 = vmatprep.subr.mxu0 0.0
    %183 = vmatpush1.msra.mxu0 0.0
    %184 = vmatprep.subr.mxu0 0.0
    %185 = vmatpush1.msra.mxu0 0.0
    %186 = vmatprep.subr.mxu0 0.0
    %187 = vmatpush1.msra.mxu0 0.0
    %188 = vmatprep.subr.mxu0 0.0
    %189 = vmatpush1.msra.mxu0 %v149
    %190 = vmatprep.subr.mxu0 0.0
    %191 = vmatpush1.msra.mxu0 %v148
    %192 = vmatprep.subr.mxu0 0.0
    %193 = vmatpush1.msra.mxu0 %v147
    %194 = vmatprep.subr.mxu0 0.0
    %195 = vmatpush1.msra.mxu0 %v146
    %196 = vmatprep.subr.mxu0 0.0
    %197 = vmatpush2.msra.mxu0 0.0
    %198 = vmatprep.subr.mxu0 0.0
    %199 = vmatpush2.msra.mxu0 0.0
    %200 = vmatprep.subr.mxu0 0.0
    %201 = vmatpush2.msra.mxu0 0.0
    %202 = vmatprep.subr.mxu0 0.0
    %203 = vmatpush2.msra.mxu0 0.0
    %204 = vmatprep.subr.mxu0 0.0
    %205 = vmatpush2.msra.mxu0 0.0
    %206 = vmatprep.subr.mxu0 0.0
    %207 = vmatpush2.msra.mxu0 0.0
    %208 = vmatprep.subr.mxu0 0.0
    %209 = vmatpush2.msra.mxu0 0.0
    %210 = vmatprep.subr.mxu0 0.0
    %211 = vmatpush2.msra.mxu0 0.0
    %212 = vmatprep.subr.mxu0 0.0
    %213 = vmatpush2.msra.mxu0 0.0
    %214 = vmatprep.subr.mxu0 0.0
    %215 = vmatpush2.msra.mxu0 0.0
    %216 = vmatprep.subr.mxu0 0.0
    %217 = vmatpush2.msra.mxu0 0.0
    %218 = vmatprep.subr.mxu0 0.0
    %219 = vmatpush2.msra.mxu0 0.0
    %220 = vmatprep.subr.mxu0 0.0
    %221 = vmatpush2.msra.mxu0 0.0
    %222 = vmatprep.subr.mxu0 0.0
    %223 = vmatpush2.msra.mxu0 0.0
    %224 = vmatprep.subr.mxu0 0.0
    %225 = vmatpush2.msra.mxu0 0.0
    %226 = vmatprep.subr.mxu0 0.0
    %227 = vmatpush2.msra.mxu0 0.0
    %228 = vmatprep.mubr.f32.mxu0 0.0
    %229 = vmatmul.mubr.f32.gmra.mxu0 %v159
    %v230 = vpop.f32.mrf.mxu0
    %v231 = vadd.f32 %v155, %v230
    %v232 = vpop.f32.mrf.mxu0
    %233 = vmatprep.mubr.f32.mxu0 0.0
    %234 = vmatmul.mubr.f32.gmra.mxu0 %v162
    %v235 = vpop.f32.mrf.mxu0
    %v236 = vadd.f32 %v155, %v235
    %v237 = vpop.f32.mrf.mxu0
    %238 = vdwg.mxu0
    %v239 = vmax.f32 %v231, 0.0
    %v240 = vmax.f32 %v236, 0.0
    %v241 = vld [vmem:[%s5] sm:$0xff]
    %v242 = vld [vmem:[%s5 + $0x8] sm:$0xff]
    %v243 = vld [vmem:[%s5 + $0x10] sm:$0xff]
    %v244 = vld [vmem:[%s5 + $0x18] sm:$0xff]
    %v245 = vld [vmem:[%s6] sm:$0x1]
    %v247 = vlaneseq
    %v248 = vshrl.u32 %v247, 7
    %v249 = vsub.s32 0, %v248
    %v250 = vrot.slane %v245, %v249
    %v253 = vsel %vm157, %v239, 0
    %v256 = vsel %vm157, %v240, 0
    %258 = vmatprep.subr.mxu0 0.0
    %259 = vmatpush1.msra.mxu0 0.0
    %260 = vmatprep.subr.mxu0 0.0
    %261 = vmatpush1.msra.mxu0 0.0
    %262 = vmatprep.subr.mxu0 0.0
    %263 = vmatpush1.msra.mxu0 0.0
    %264 = vmatprep.subr.mxu0 0.0
    %265 = vmatpush1.msra.mxu0 0.0
    %266 = vmatprep.subr.mxu0 0.0
    %267 = vmatpush1.msra.mxu0 0.0
    %268 = vmatprep.subr.mxu0 0.0
    %269 = vmatpush1.msra.mxu0 0.0
    %270 = vmatprep.subr.mxu0 0.0
    %271 = vmatpush1.msra.mxu0 0.0
    %272 = vmatprep.subr.mxu0 0.0
    %273 = vmatpush1.msra.mxu0 0.0
    %274 = vmatprep.subr.mxu0 0.0
    %275 = vmatpush1.msra.mxu0 0.0
    %276 = vmatprep.subr.mxu0 0.0
    %277 = vmatpush1.msra.mxu0 0.0
    %278 = vmatprep.subr.mxu0 0.0
    %279 = vmatpush1.msra.mxu0 0.0
    %280 = vmatprep.subr.mxu0 0.0
    %281 = vmatpush1.msra.mxu0 0.0
    %282 = vmatprep.subr.mxu0 0.0
    %283 = vmatpush1.msra.mxu0 %v244
    %284 = vmatprep.subr.mxu0 0.0
    %285 = vmatpush1.msra.mxu0 %v243
    %286 = vmatprep.subr.mxu0 0.0
    %287 = vmatpush1.msra.mxu0 %v242
    %288 = vmatprep.subr.mxu0 0.0
    %289 = vmatpush1.msra.mxu0 %v241
    %290 = vmatprep.subr.mxu0 0.0
    %291 = vmatpush2.msra.mxu0 0.0
    %292 = vmatprep.subr.mxu0 0.0
    %293 = vmatpush2.msra.mxu0 0.0
    %294 = vmatprep.subr.mxu0 0.0
    %295 = vmatpush2.msra.mxu0 0.0
    %296 = vmatprep.subr.mxu0 0.0
    %297 = vmatpush2.msra.mxu0 0.0
    %298 = vmatprep.subr.mxu0 0.0
    %299 = vmatpush2.msra.mxu0 0.0
    %300 = vmatprep.subr.mxu0 0.0
    %301 = vmatpush2.msra.mxu0 0.0
    %302 = vmatprep.subr.mxu0 0.0
    %303 = vmatpush2.msra.mxu0 0.0
    %304 = vmatprep.subr.mxu0 0.0
    %305 = vmatpush2.msra.mxu0 0.0
    %306 = vmatprep.subr.mxu0 0.0
    %307 = vmatpush2.msra.mxu0 0.0
    %308 = vmatprep.subr.mxu0 0.0
    %309 = vmatpush2.msra.mxu0 0.0
    %310 = vmatprep.subr.mxu0 0.0
    %311 = vmatpush2.msra.mxu0 0.0
    %312 = vmatprep.subr.mxu0 0.0
    %313 = vmatpush2.msra.mxu0 0.0
    %314 = vmatprep.subr.mxu0 0.0
    %315 = vmatpush2.msra.mxu0 0.0
    %316 = vmatprep.subr.mxu0 0.0
    %317 = vmatpush2.msra.mxu0 0.0
    %318 = vmatprep.subr.mxu0 0.0
    %319 = vmatpush2.msra.mxu0 0.0
    %320 = vmatprep.subr.mxu0 0.0
    %321 = vmatpush2.msra.mxu0 0.0
    %322 = vmatprep.mubr.f32.mxu0 0.0
    %323 = vmatmul.mubr.f32.gmra.mxu0 %v253
    %v324 = vpop.f32.mrf.mxu0
    %v325 = vadd.f32 %v250, %v324
    %v326 = vpop.f32.mrf.mxu0
    %327 = vmatprep.mubr.f32.mxu0 0.0
    %328 = vmatmul.mubr.f32.gmra.mxu0 %v256
    %v329 = vpop.f32.mrf.mxu0
    %v330 = vadd.f32 %v250, %v329
    %v331 = vpop.f32.mrf.mxu0
    %332 = vdwg.mxu0
    %v333 = vmax.f32 %v325, 0.0
    %v334 = vmax.f32 %v330, 0.0
    %v335 = vld [vmem:[%s7] sm:$0xff]
    %v336 = vld [vmem:[%s7 + $0x8] sm:$0xff]
    %v337 = vld [vmem:[%s7 + $0x10] sm:$0xff]
    %v338 = vld [vmem:[%s7 + $0x18] sm:$0xff]
    %v339 = vld [vmem:[%s7 + $0x20] sm:$0xff]
    %v340 = vld [vmem:[%s7 + $0x28] sm:$0xff]
    %v341 = vld [vmem:[%s7 + $0x30] sm:$0xff]
    %v342 = vld [vmem:[%s7 + $0x38] sm:$0xff]
    %v343 = vld [vmem:[%s8] sm:$0x1]
    %v345 = vlaneseq
    %v346 = vshrl.u32 %v345, 7
    %v347 = vsub.s32 0, %v346
    %v348 = vrot.slane %v343, %v347
    %vm350 = vcmask 523264
    %v352 = vsel %vm350, %v333, 0
    %v355 = vsel %vm350, %v334, 0
    %357 = vmatprep.subr.mxu0 0.0
    %358 = vmatpush1.msra.mxu0 0.0
    %359 = vmatprep.subr.mxu0 0.0
    %360 = vmatpush1.msra.mxu0 0.0
    %361 = vmatprep.subr.mxu0 0.0
    %362 = vmatpush1.msra.mxu0 0.0
    %363 = vmatprep.subr.mxu0 0.0
    %364 = vmatpush1.msra.mxu0 0.0
    %365 = vmatprep.subr.mxu0 0.0
    %366 = vmatpush1.msra.mxu0 0.0
    %367 = vmatprep.subr.mxu0 0.0
    %368 = vmatpush1.msra.mxu0 0.0
    %369 = vmatprep.subr.mxu0 0.0
    %370 = vmatpush1.msra.mxu0 0.0
    %371 = vmatprep.subr.mxu0 0.0
    %372 = vmatpush1.msra.mxu0 0.0
    %373 = vmatprep.subr.mxu0 0.0
    %374 = vmatpush1.msra.mxu0 %v342
    %375 = vmatprep.subr.mxu0 0.0
    %376 = vmatpush1.msra.mxu0 %v341
    %377 = vmatprep.subr.mxu0 0.0
    %378 = vmatpush1.msra.mxu0 %v340
    %379 = vmatprep.subr.mxu0 0.0
    %380 = vmatpush1.msra.mxu0 %v339
    %381 = vmatprep.subr.mxu0 0.0
    %382 = vmatpush1.msra.mxu0 %v338
    %383 = vmatprep.subr.mxu0 0.0
    %384 = vmatpush1.msra.mxu0 %v337
    %385 = vmatprep.subr.mxu0 0.0
    %386 = vmatpush1.msra.mxu0 %v336
    %387 = vmatprep.subr.mxu0 0.0
    %388 = vmatpush1.msra.mxu0 %v335
    %389 = vmatprep.subr.mxu0 0.0
    %390 = vmatpush2.msra.mxu0 0.0
    %391 = vmatprep.subr.mxu0 0.0
    %392 = vmatpush2.msra.mxu0 0.0
    %393 = vmatprep.subr.mxu0 0.0
    %394 = vmatpush2.msra.mxu0 0.0
    %395 = vmatprep.subr.mxu0 0.0
    %396 = vmatpush2.msra.mxu0 0.0
    %397 = vmatprep.subr.mxu0 0.0
    %398 = vmatpush2.msra.mxu0 0.0
    %399 = vmatprep.subr.mxu0 0.0
    %400 = vmatpush2.msra.mxu0 0.0
    %401 = vmatprep.subr.mxu0 0.0
    %402 = vmatpush2.msra.mxu0 0.0
    %403 = vmatprep.subr.mxu0 0.0
    %404 = vmatpush2.msra.mxu0 0.0
    %405 = vmatprep.subr.mxu0 0.0
    %406 = vmatpush2.msra.mxu0 0.0
    %407 = vmatprep.subr.mxu0 0.0
    %408 = vmatpush2.msra.mxu0 0.0
    %409 = vmatprep.subr.mxu0 0.0
    %410 = vmatpush2.msra.mxu0 0.0
    %411 = vmatprep.subr.mxu0 0.0
    %412 = vmatpush2.msra.mxu0 0.0
    %413 = vmatprep.subr.mxu0 0.0
    %414 = vmatpush2.msra.mxu0 0.0
    %415 = vmatprep.subr.mxu0 0.0
    %416 = vmatpush2.msra.mxu0 0.0
    %417 = vmatprep.subr.mxu0 0.0
    %418 = vmatpush2.msra.mxu0 0.0
    %419 = vmatprep.subr.mxu0 0.0
    %420 = vmatpush2.msra.mxu0 0.0
    %421 = vmatprep.mubr.f32.mxu0 0.0
    %422 = vmatmul.mubr.f32.gmra.mxu0 %v352
    %v423 = vpop.f32.mrf.mxu0
    %v424 = vadd.f32 %v348, %v423
    %v425 = vpop.f32.mrf.mxu0
    %426 = vmatprep.mubr.f32.mxu0 0.0
    %427 = vmatmul.mubr.f32.gmra.mxu0 %v355
    %v428 = vpop.f32.mrf.mxu0
    %v429 = vadd.f32 %v348, %v428
    %v430 = vpop.f32.mrf.mxu0
    %431 = vdwg.mxu0
    %434 = vrot.lane.b32.xlu0 %v424, 120
    %v435 = vpop.permute.xlu0 %434
    %436 = vrot.lane.b32.xlu0 %v429, 120
    %v437 = vpop.permute.xlu0 %436
    %v440 = vsub.f32 %v424, %v435
    %v441 = vsub.f32 %v429, %v437
    %442 = vset.pattern.permute.xlu0 16
    %443 = vperm.xlu0 %442, %v46
    %v444 = vpop.permute.xlu0 %443
    %446 = vset.pattern.permute.xlu0 16
    %447 = vperm.xlu0 %446, %v47
    %v448 = vpop.permute.xlu0 %447
    %v450 = vmul.f32 %v444, %v440
    %v451 = vmul.f32 %v448, %v441
    %454 = vrot.lane.b32.xlu0 %v450, 8
    %v455 = vpop.permute.xlu0 %454
    %456 = vrot.lane.b32.xlu0 %v451, 8
    %v457 = vpop.permute.xlu0 %456
    %v460 = vadd.f32 %v424, %v455
    %v461 = vadd.f32 %v429, %v457
    %464 = vrot.lane.b32.xlu0 %v460, 120
    %v465 = vpop.permute.xlu0 %464
    %466 = vrot.lane.b32.xlu0 %v461, 120
    %v467 = vpop.permute.xlu0 %466
    %vm470 = vcmask 64512
    %471 = vst.msk [vmem:[%s9] sm:$0xff] %vm470, %v465
    %472 = vst.msk [vmem:[%s9 + $0x8] sm:$0xff] %vm470, %v467
    // Predicated region
    $region42: #{tpu_custom_call.1} parent=1 // pred_check
      _
    $region43: #{tpu_custom_call.1} parent=1 // pred_check_branch
      %474 = sbr.rel (0) target = $region45
    $region44: #{tpu_custom_call.1} parent=1 // pred_region
      _
    $region45: #{tpu_custom_call.1} parent=1 // pred_fallthru
      _
    // Predicated region
    $region46: #{tpu_custom_call.1} parent=1 // pred_check
      _
    $region47: #{tpu_custom_call.1} parent=1 // pred_check_branch
      %476 = sbr.rel (0) target = $region49
    $region48: #{tpu_custom_call.1} parent=1 // pred_region
      _
    $region49: #{tpu_custom_call.1} parent=1 // pred_fallthru
      _
    %477 = vsyncpa [#allocation3], 1

</llo_original>
